<compile_context>
chip_gen: v7x
topology: tpu7x:2x2x1
jax: 0.10.0
libtpu: 0.0.40
codegen_flags: <defaults>
</compile_context>

<pallas_src>
import functools
import math

import jax
import jax.numpy as jnp
from jax.experimental import pallas as pl
from jax.experimental.pallas import tpu as pltpu


def make_positional_encoding_table(d_model: int, max_len: int) -> jnp.ndarray:
    """Deterministic PE buffer, identical to the PyTorch __init__ (even d_model)."""
    position = jnp.arange(max_len, dtype=jnp.float32)[:, None]              # [max_len, 1]
    div_term = jnp.exp(
        jnp.arange(0, d_model, 2, dtype=jnp.float32) * (-math.log(10000.0) / d_model)
    )                                                                       # [d_model/2]
    pe = jnp.zeros((max_len, 1, d_model), dtype=jnp.float32)
    pe = pe.at[:, 0, 0::2].set(jnp.sin(position * div_term))
    pe = pe.at[:, 0, 1::2].set(jnp.cos(position * div_term))
    return pe


# "lowbias32" mixer constants, expressed as int32 so every vector op in the mask
# path is a plain signed-i32 mul/xor/shift/and (robust on Mosaic and in interpret).
_GOLD_I32 = 0x9E3779B1 - (1 << 32)
_M1_I32 = 0x7FEB352D
_M2_I32 = 0x846CA68B - (1 << 32)


def _lowbias32_i32(x):
    """lowbias32 hash on int32 lanes; logical right shifts emulated with masks."""
    x = (x ^ ((x >> 16) & 0xFFFF)) * jnp.int32(_M1_I32)
    x = (x ^ ((x >> 15) & 0x1FFFF)) * jnp.int32(_M2_I32)
    x = x ^ ((x >> 16) & 0xFFFF)
    return x


def _pe_dropout_kernel(seed_ref, x_ref, pe_ref, o_ref, *, batch, dropout_p, training):
    # x_ref/o_ref: [tile_s, B*D]   pe_ref: [tile_s, D]
    pe_blk = pe_ref[...].astype(x_ref.dtype)          # add in x's dtype (bf16-friendly)
    if batch > 1:
        # Lane-replicate the PE row over the batch: result[:, b*D + d] = pe[:, d].
        pe_blk = jnp.concatenate([pe_blk] * batch, axis=1)
    y = x_ref[...] + pe_blk

    if training and dropout_p > 0.0:
        tile_s, width = y.shape
        # Global element id -> dropout mask independent of the tiling.
        row0 = pl.program_id(0) * tile_s
        rows = jax.lax.broadcasted_iota(jnp.int32, y.shape, 0) + row0
        cols = jax.lax.broadcasted_iota(jnp.int32, y.shape, 1)
        flat = rows * width + cols
        h = _lowbias32_i32(flat ^ (seed_ref[0] * jnp.int32(_GOLD_I32)))
        bits24 = (h >> 8) & 0xFFFFFF                   # top 24 hash bits (logical)
        thresh = int(round(float(dropout_p) * (1 << 24)))
        keep = bits24 >= thresh                        # P(keep) = 1 - p
        scale = 1.0 / (1.0 - float(dropout_p))         # inverted dropout, hoisted const
        y = jnp.where(keep, y * scale, 0.0)

    o_ref[...] = y.astype(o_ref.dtype)


def _choose_tile_s(seq_len, row_bytes, target_block_bytes=2 << 20):
    """Seq tile: multiple of 8, ~2 MiB per x block (fits every gen's scoped VMEM
    with double buffering), and >=2 grid steps when S allows (v7x megacore)."""
    s8 = ((seq_len + 7) // 8) * 8
    tile = max(8, (target_block_bytes // max(row_bytes, 1)) // 8 * 8)
    tile = min(tile, s8)
    if tile >= s8 and s8 >= 16:
        tile = max(8, (s8 // 2) // 8 * 8)
    return int(tile)


def positional_encoding_forward(x, pe, seed, *, dropout_p=0.1, training=False,
                                tile_s=None):
    """x: [S, B, D]; pe: [max_len, 1, D] float32; seed: int32[1]."""
    S, B, D = x.shape
    max_len = pe.shape[0]
    assert pe.shape == (max_len, 1, D) and S <= max_len

    # Lane-dense views (free reshapes of contiguous arrays).
    x2 = x.reshape(S, B * D)
    pe2 = pe.reshape(max_len, D)      # full table; index_map picks the rows

    if tile_s is None:
        tile_s = _choose_tile_s(S, B * D * x.dtype.itemsize)
    grid = pl.cdiv(S, tile_s)         # ragged tail handled by block masking

    kernel = functools.partial(_pe_dropout_kernel, batch=B,
                               dropout_p=float(dropout_p),
                               training=bool(training))

    out2 = pl.pallas_call(
        kernel,
        out_shape=jax.ShapeDtypeStruct((S, B * D), x.dtype),
        grid_spec=pltpu.PrefetchScalarGridSpec(
            num_scalar_prefetch=1,                      # seed lands in SMEM
            grid=(grid,),
            in_specs=[
                pl.BlockSpec((tile_s, B * D), lambda i, _seed: (i, 0)),
                pl.BlockSpec((tile_s, D), lambda i, _seed: (i, 0)),
            ],
            out_specs=pl.BlockSpec((tile_s, B * D), lambda i, _seed: (i, 0)),
        ),
        compiler_params=pltpu.CompilerParams(
            dimension_semantics=("parallel",)),
    )(seed, x2, pe2)
    return out2.reshape(S, B, D)


if __name__ == "__main__":
    # Small shapes consistent with the module's [seq_len, batch, d_model] input.
    SEQ, BATCH, D_MODEL, MAX_LEN = 8, 2, 32, 64

    key = jax.random.PRNGKey(0)
    x = jax.random.normal(key, (SEQ, BATCH, D_MODEL), dtype=jnp.float32)
    pe = make_positional_encoding_table(D_MODEL, MAX_LEN)
    seed = jnp.array([0], dtype=jnp.int32)

    # Eval mode (dropout is identity) -> exact check against reference.
    out_eval = positional_encoding_forward(x, pe, seed,
                                           dropout_p=0.1, training=False)
    out_eval = jax.block_until_ready(out_eval)
    ref = x + pe[:SEQ]                 # broadcasts [S,1,D] over batch
    assert out_eval.shape == (SEQ, BATCH, D_MODEL)
    assert jnp.allclose(out_eval, ref, atol=1e-6, rtol=1e-6)

    # Training mode: exercises the in-kernel hash-PRNG dropout path (stochastic,
    # so only sanity-check that surviving elements equal ref / (1 - p)).
    out_train = positional_encoding_forward(x, pe, seed,
                                            dropout_p=0.1, training=True)
    out_train = jax.block_until_ready(out_train)
    kept = out_train != 0.0
    assert bool(jnp.any(kept))
    assert jnp.allclose(jnp.where(kept, out_train, 0.0),
                        jnp.where(kept, ref / 0.9, 0.0), atol=1e-5, rtol=1e-5)

    print("KERNEL_OK")
</pallas_src>

<mosaic_0001>
module attributes {stable_mosaic.version = 11 : i64} {
  func.func @_pe_dropout_kernel(%arg0: i32, %arg1: memref<1xi32, #tpu.memory_space<smem>>, %arg2: memref<8x64xf32, #tpu.memory_space<vmem>>, %arg3: memref<8x32xf32, #tpu.memory_space<vmem>>, %arg4: memref<8x64xf32, #tpu.memory_space<vmem>>) attributes {dimension_semantics = [#tpu.dimension_semantics<parallel>], iteration_bounds = array<i64: 1>, scalar_prefetch = 1 : i64, scratch_operands = 0 : i64, tpu.core_type = #tpu.core_type<tc>, window_params = [{transform_indices = @transform_0, window_bounds = array<i64: 8, 64>}, {transform_indices = @transform_1, window_bounds = array<i64: 8, 32>}, {transform_indices = @transform_2, window_bounds = array<i64: 8, 64>}]} {
    %c0 = arith.constant 0 : index
    %c0_0 = arith.constant 0 : index
    %0 = vector.load %arg3[%c0, %c0_0] : memref<8x32xf32, #tpu.memory_space<vmem>>, vector<8x32xf32>
    %1 = tpu.concatenate %0, %0 in 1 : vector<8x32xf32>, vector<8x32xf32> -> vector<8x64xf32>
    %c0_1 = arith.constant 0 : index
    %c0_2 = arith.constant 0 : index
    %2 = vector.load %arg2[%c0_1, %c0_2] : memref<8x64xf32, #tpu.memory_space<vmem>>, vector<8x64xf32>
    %3 = arith.addf %2, %1 : vector<8x64xf32>
    %c0_3 = arith.constant 0 : index
    %c0_4 = arith.constant 0 : index
    %4 = vector.load %arg4[%c0_3, %c0_4] : memref<8x64xf32, #tpu.memory_space<vmem>>, vector<8x64xf32>
    tpu.vector_store %arg4[%c0_3, %c0_4], %3 {strides = array<i32>} : memref<8x64xf32, #tpu.memory_space<vmem>>, vector<8x64xf32>,
    return
  }
  func.func @transform_0(%arg0: i32, %arg1: memref<1xi32, #tpu.memory_space<smem>>) -> (i32, i32) {
    %c0_i32 = arith.constant 0 : i32
    %c0_i32_0 = arith.constant 0 : i32
    return %arg0, %c0_i32 : i32, i32
  }
  func.func @transform_1(%arg0: i32, %arg1: memref<1xi32, #tpu.memory_space<smem>>) -> (i32, i32) {
    %c0_i32 = arith.constant 0 : i32
    %c0_i32_0 = arith.constant 0 : i32
    return %arg0, %c0_i32 : i32, i32
  }
  func.func @transform_2(%arg0: i32, %arg1: memref<1xi32, #tpu.memory_space<smem>>) -> (i32, i32) {
    %c0_i32 = arith.constant 0 : i32
    %c0_i32_0 = arith.constant 0 : i32
    return %arg0, %c0_i32 : i32, i32
  }
}

</mosaic_0001>

<llo_original>
// kernel: tpu_custom_call.1
$region0: #{tpu_custom_call.1}
  #allocation0 [shape = 'u32[]', space=smem, size = 0x4, offset = 0x4, fixed_abs, tag = 'smem constant byte address 0x4 - core index']
  #allocation1 [shape = 'u32[144,128]{1,0:T(1,128)}', space=vmem, size = 0x12000, scoped, tag = 'internal scratch']
  #allocation2 [shape = 's32[1]{0}', space=sflag, size = 0x4, scoped, tag = 'scoped memory for tpu_custom_call.1']
  #allocation3 [shape = 's32[1]{0:T(128)S(6)}', space=smem, size = 0x200, scoped, tag = 'prefetched SMEM operand 0']
  %s0 = inlined_call_operand.<no memory space> [shape: s32[1], index: 0, kind: input, shape index: {}]
  %s1 = inlined_call_operand.vmem [shape: f32[8,64], index: 1, kind: input, shape index: {}]
  %s2 = inlined_call_operand.vmem [shape: f32[64,32], index: 2, kind: input, shape index: {}]
  %s3 = inlined_call_operand.hbm [shape: f32[8,64], index: 3, kind: output, shape index: {}]
  %s4 = sld [smem:[#allocation0]]
  $region18: #{tpu_custom_call.1} parent=0
    _
  %s6 = ssub.s32 1, %s4
  %s7 = scalar_select 0, %s6, %s4
  %8 = sst [smem:[#allocation3]] %s0
  $region1: #{tpu_custom_call.1} parent=0
    #allocation4 [shape = 'u8[4096]{0}', space=vmem, size = 0x1000, scoped, tag = 'output window, operand 0, single buffered']
    #allocation5 [shape = 's32[1]{0}', space=sflag, size = 0x4, scoped, tag = 'scoped memory for tpu_custom_call.1']
    %9 = vsyncpa [#allocation5], 0
    // Predicated region
    $region2: #{tpu_custom_call.1} parent=1 // pred_check
      _
    $region3: #{tpu_custom_call.1} parent=1 // pred_check_branch
      %11 = sbr.rel (0) target = $region5
    $region4: #{tpu_custom_call.1} parent=1 // pred_region
      _
    $region5: #{tpu_custom_call.1} parent=1 // pred_fallthru
      _
    // Predicated region
    $region6: #{tpu_custom_call.1} parent=1 // pred_check
      _
    $region7: #{tpu_custom_call.1} parent=1 // pred_check_branch
      %13 = sbr.rel (0) target = $region9
    $region8: #{tpu_custom_call.1} parent=1 // pred_region
      _
    $region9: #{tpu_custom_call.1} parent=1 // pred_fallthru
      _
    %v14 = vld [vmem:[%s2] sm:$0xff]
    %16 = vrot.lane.b32.xlu0 %v14, 32
    %v17 = vpop.permute.xlu0 %16
    %vm19 = vcmask 261120
    %v20 = vsel %vm19, %v14, %v17
    %v21 = vld [vmem:[%s1] sm:$0xff]
    %v22 = vadd.f32 %v21, %v20
    %vm23 = vcmask 523264
    %24 = vst.msk [vmem:[#allocation4] sm:$0xff] %vm23, %v22
    // Predicated region
    $region10: #{tpu_custom_call.1} parent=1 // pred_check
      _
    $region11: #{tpu_custom_call.1} parent=1 // pred_check_branch
      %26 = sbr.rel (0) target = $region13
    $region12: #{tpu_custom_call.1} parent=1 // pred_region
      %s28 = ssub.s32 128, 128
      %29 = vsyncadd [#allocation5], %s28
      %s31 = sshll.u32 [#allocation4], 4
      %s32 = int_to_ptr.vmem [resolvable:$true] %s31
      %34 = dma.vmem_to_hbm [thread:$0]  %s32, 128, %s3, [#allocation5]
    $region13: #{tpu_custom_call.1} parent=1 // pred_fallthru
      _
    // Predicated region
    $region14: #{tpu_custom_call.1} parent=1 // pred_check
      _
    $region15: #{tpu_custom_call.1} parent=1 // pred_check_branch
      %36 = sbr.rel (0) target = $region17
    $region16: #{tpu_custom_call.1} parent=1 // pred_region
      %37 = dma.done [#allocation5], 128
    $region17: #{tpu_custom_call.1} parent=1 // pred_fallthru
      _
    %38 = vsyncpa [#allocation5], 1

</llo_original>
